<compile_context>
chip_gen: v7x
topology: tpu7x:2x2x1
jax: 0.10.0
libtpu: 0.0.40
codegen_flags: <defaults>
</compile_context>

<pallas_src>
import functools
import math

import numpy as np
import jax
import jax.numpy as jnp
from jax.experimental import pallas as pl
from jax.experimental.pallas import tpu as pltpu


# ---------------------------------------------------------------------------
# Kernels
# ---------------------------------------------------------------------------

def _mask_row_kernel(x_ref, mrow_ref, o_ref, *, mask_value):
    """better=False: one shared (1, TD) keep-row broadcast over the batch tile."""
    x = x_ref[...]                                   # (TB, TD)
    keep = mrow_ref[...] > 0.5                       # (1, TD), mask is exact 0/1
    fill = jnp.asarray(0.0 if mask_value is None else mask_value, dtype=x.dtype)
    # where (not multiply) so NaN/Inf at dropped positions are filled, matching
    # torch .where semantics exactly.
    o_ref[...] = jnp.where(keep, x, fill)


def _mask_tight_kernel(x_ref, tight_ref, sel_ref, o_ref, *, mask_value):
    """better=True: expand the (TB, Kp) tight mask to (TB, TD) on the MXU."""
    x = x_ref[...]                                   # (TB, TD)
    tight = tight_ref[...]                           # (TB, Kp)  bf16, exact 0/1
    sel = sel_ref[...]                               # (Kp, TD)  bf16 one-hot selector
    # full_mask[b, d] = tight[b, group(d)] -- tiny matmul on the otherwise-idle
    # MXU.  bf16 operands keep it single-pass on v5e; 0/1 values stay exact in
    # the f32 accumulator.
    m = jnp.dot(tight, sel, preferred_element_type=jnp.float32)   # (TB, TD)
    fill = jnp.asarray(0.0 if mask_value is None else mask_value, dtype=x.dtype)
    o_ref[...] = jnp.where(m > 0.5, x, fill)


# ---------------------------------------------------------------------------
# Wrapper
# ---------------------------------------------------------------------------

class MaskPallas:
    """JAX/Pallas port of the PyTorch Mask module (forward semantics preserved)."""

    def __init__(self, dims, sparsity, mask_value=None):
        if sparsity < 0.0 or sparsity > 1.0:
            raise ValueError(
                f"sparsity has to be between 0 and 1, but got {sparsity}")
        self.p = float(sparsity)
        self.dims = [int(d) for d in dims]
        self.mask_value = mask_value

        D = sum(self.dims)
        K = len(self.dims)
        self.D, self.K = D, K

        # Static per-feature group ids (D,) and one-hot selector (K, D).
        seg = np.concatenate(
            [np.full((d,), i, dtype=np.int32) for i, d in enumerate(self.dims)])
        self.seg_ids = jnp.asarray(seg)                            # (D,) int32
        sel = np.zeros((K, D), dtype=np.float32)
        sel[seg, np.arange(D)] = 1.0
        self.selector = jnp.asarray(sel, dtype=jnp.bfloat16)       # (K, D)

        # Row-packing factor for lane-dense stores: r logical rows per physical
        # row of width r*D = lcm(D, 128).  Only used when B % r == 0 and the
        # packed selector stays small.
        r = math.lcm(D, 128) // D
        sel_packed_bytes = (r * K) * (r * D) * 2                   # bf16
        if r > 1 and r * D <= 4096 and sel_packed_bytes <= (2 << 20):
            self.pack_r = r
            sp = np.zeros((r * K, r * D), dtype=np.float32)
            for q in range(r):
                sp[q * K:(q + 1) * K, q * D:(q + 1) * D] = sel
            self.selector_packed = jnp.asarray(sp, dtype=jnp.bfloat16)
        else:
            self.pack_r = 1
            self.selector_packed = None

    # -- tiling helpers -----------------------------------------------------

    @staticmethod
    def _vmem_budget_bytes():
        """VMEM budget for this kernel: ~3/4 of physical capacity (detected when
        possible; conservative 64 MiB v7x fallback so it fits every generation)."""
        cap = 64 << 20
        try:
            cap = int(pltpu.get_tpu_info().vmem_capacity_bytes)
        except Exception:
            pass
        return min(cap * 3 // 4, 96 << 20)

    @staticmethod
    def _pick_batch_tile(b_eff, row_bytes, sub, per_stream_bytes):
        """Largest batch tile (multiple of the dtype sublane-packing factor)
        whose x-tile fits the per-stream budget (2x x + 2x out double-buffered)."""
        if b_eff <= sub:
            return b_eff                       # block must equal full dim if small
        tb = min(b_eff, max(sub, per_stream_bytes // max(row_bytes, 1)))
        return max(sub, (tb // sub) * sub)

    # -- forward ------------------------------------------------------------

    def __call__(self, x, key, training=True, better=False):
        D, K = self.D, self.K
        assert x.shape[1] == D, (
            f"input must be of shape (x, {D}) but it is {x.shape}")
        if (not training) or self.p == 0.0:
            return x

        # TODO(synk): when this op sits between other elementwise producers /
        # consumers, letting XLA fuse the (better=False) mask avoids a full
        # extra HBM round-trip of x that no in-kernel optimization can beat.

        B = x.shape[0]
        itemsize = jnp.dtype(x.dtype).itemsize
        sub = max(8, 32 // itemsize)           # sublane packing: f32 8, bf16 16, int8 32

        # ----- lane-dense row packing (free row-major reshape) -------------
        r = self.pack_r if (self.pack_r > 1 and B % self.pack_r == 0) else 1
        b_eff = B // r
        W = r * D                              # effective feature width
        x_in = x.reshape(b_eff, W)

        # ----- tiling -------------------------------------------------------
        vmem_limit = self._vmem_budget_bytes()
        per_stream = max(vmem_limit // 4 - (1 << 20), 1 << 20)
        tb = self._pick_batch_tile(b_eff, W * itemsize, sub, per_stream)
        nb = pl.cdiv(b_eff, tb)

        # Second (feature) grid axis so both v7x TensorCores get work and the
        # DMA pipeline has >= 2 steps when the whole batch fits a single tile.
        nf = 1
        if nb == 1 and W % 128 == 0 and W >= 256:
            nlanes = W // 128
            for cand in (2, 3, 4, 5, nlanes):
                if nlanes % cand == 0:
                    nf = cand
                    break
        td = W // nf
        grid = (nb, nf)

        cost = pl.CostEstimate(
            flops=(2 * B * K * D) if better else 0,
            transcendentals=0,
            bytes_accessed=2 * B * D * itemsize)
        cparams = pltpu.CompilerParams(
            dimension_semantics=("parallel", "parallel"),
            vmem_limit_bytes=int(vmem_limit))

        if better:
            # torch: tight_mask = rand((B, K)) < p ; keep where True.
            tight = jax.random.uniform(key, (B, K)) < self.p
            tight_in = tight.astype(jnp.bfloat16).reshape(b_eff, r * K)
            sel_in = self.selector_packed if r > 1 else self.selector
            Kp = r * K
            kernel = functools.partial(
                _mask_tight_kernel, mask_value=self.mask_value)
            out = pl.pallas_call(
                kernel,
                out_shape=jax.ShapeDtypeStruct((b_eff, W), x.dtype),
                grid=grid,
                in_specs=[
                    pl.BlockSpec((tb, td), lambda i, j: (i, j)),   # x tile
                    pl.BlockSpec((tb, Kp), lambda i, j: (i, 0)),   # tight mask tile
                    pl.BlockSpec((Kp, td), lambda i, j: (0, j)),   # static selector
                ],
                out_specs=pl.BlockSpec((tb, td), lambda i, j: (i, j)),
                compiler_params=cparams,
                cost_estimate=cost,
            )(x_in, tight_in, sel_in)
        else:
            # torch: tight_mask = rand(K) > p ; same mask for the whole batch.
            tight1d = jax.random.uniform(key, (K,)) > self.p
            row = jnp.take(tight1d, self.seg_ids).astype(x.dtype)  # (D,) exact 0/1
            row_in = jnp.tile(row, (r,)).reshape(1, W)             # packed keep-row
            kernel = functools.partial(
                _mask_row_kernel, mask_value=self.mask_value)
            out = pl.pallas_call(
                kernel,
                out_shape=jax.ShapeDtypeStruct((b_eff, W), x.dtype),
                grid=grid,
                in_specs=[
                    pl.BlockSpec((tb, td), lambda i, j: (i, j)),   # x tile
                    pl.BlockSpec((1, td), lambda i, j: (0, j)),    # shared mask row
                ],
                out_specs=pl.BlockSpec((tb, td), lambda i, j: (i, j)),
                compiler_params=cparams,
                cost_estimate=cost,
            )(x_in, row_in)

        return out.reshape(B, D)


# ---------------------------------------------------------------------------
# Reference & self-test
# ---------------------------------------------------------------------------

def _reference(x, seg_ids, tight_bool, mask_value):
    """Plain-JAX reference mirroring torch's x.where(full_mask, fill)."""
    full_mask = jnp.take(tight_bool, seg_ids, axis=1)              # (B, D) bool
    fill = (jnp.zeros_like(x) if mask_value is None
            else jnp.full_like(x, mask_value))
    return jnp.where(full_mask, x, fill)


if __name__ == "__main__":
    # 5 condition groups, one-hot subvector widths [4, 3, 5, 2, 10] -> D = 24.
    dims = [4, 3, 5, 2, 10]
    D = sum(dims)
    K = len(dims)
    p = 0.4

    key = jax.random.PRNGKey(0)
    kx, kmask = jax.random.split(key)

    # --- packed, lane-dense path: B = 32 is a multiple of r = lcm(24,128)/24 = 16
    B = 32
    x = jax.random.normal(kx, (B, D), dtype=jnp.float32)

    # better=False, mask_value=None (zeros fill)
    mod = MaskPallas(dims, sparsity=p, mask_value=None)
    out = jax.block_until_ready(mod(x, kmask, training=True, better=False))
    tight1d = jax.random.uniform(kmask, (K,)) > p
    tight_f = jnp.broadcast_to(tight1d[None, :], (B, K))
    ref = _reference(x, mod.seg_ids, tight_f, None)
    assert jnp.allclose(out, ref), "mismatch vs reference (better=False, packed)"

    # better=True, non-None mask_value
    mod2 = MaskPallas(dims, sparsity=p, mask_value=-1.0)
    out2 = jax.block_until_ready(mod2(x, kmask, training=True, better=True))
    tight_t = jax.random.uniform(kmask, (B, K)) < p
    ref2 = _reference(x, mod2.seg_ids, tight_t, -1.0)
    assert jnp.allclose(out2, ref2), "mismatch vs reference (better=True, packed)"

    # --- fallback (unpacked) path: B = 8 is not a multiple of 16
    Bs = 8
    xs = jax.random.normal(kx, (Bs, D), dtype=jnp.float32)
    out3 = jax.block_until_ready(mod(xs, kmask, training=True, better=True))
    tight_ts = jax.random.uniform(kmask, (Bs, K)) < p
    ref3 = _reference(xs, mod.seg_ids, tight_ts, None)
    assert jnp.allclose(out3, ref3), "mismatch vs reference (better=True, unpacked)"

    out4 = jax.block_until_ready(mod2(xs, kmask, training=True, better=False))
    tight_fs = jnp.broadcast_to(tight1d[None, :], (Bs, K))
    ref4 = _reference(xs, mod2.seg_ids, tight_fs, -1.0)
    assert jnp.allclose(out4, ref4), "mismatch vs reference (better=False, unpacked)"

    # --- bf16 dtype path (sublane multiple 16) --------------------------------
    xb = x.astype(jnp.bfloat16)
    out5 = jax.block_until_ready(mod(xb, kmask, training=True, better=False))
    ref5 = _reference(xb, mod.seg_ids, tight_f, None)
    assert jnp.allclose(out5.astype(jnp.float32), ref5.astype(jnp.float32)), \
        "mismatch vs reference (bf16)"

    # --- eval / p==0 passthrough ----------------------------------------------
    out_eval = mod(x, kmask, training=False)
    assert jnp.allclose(out_eval, x)

    print("KERNEL_OK")
</pallas_src>

<mosaic_0001>
module attributes {stable_mosaic.version = 11 : i64} {
  func.func @_mask_row_kernel(%arg0: i32, %arg1: i32, %arg2: memref<2x128xf32, #tpu.memory_space<vmem>>, %arg3: memref<1x128xf32, #tpu.memory_space<vmem>>, %arg4: memref<2x128xf32, #tpu.memory_space<vmem>>) attributes {dimension_semantics = [#tpu.dimension_semantics<parallel>, #tpu.dimension_semantics<parallel>], iteration_bounds = array<i64: 1, 3>, scalar_prefetch = 0 : i64, scratch_operands = 0 : i64, tpu.core_type = #tpu.core_type<tc>, window_params = [{transform_indices = @transform_0, window_bounds = array<i64: 2, 128>}, {transform_indices = @transform_1, window_bounds = array<i64: 1, 128>}, {transform_indices = @transform_2, window_bounds = array<i64: 2, 128>}]} {
    %c0 = arith.constant 0 : index
    %c0_0 = arith.constant 0 : index
    %0 = vector.load %arg2[%c0, %c0_0] : memref<2x128xf32, #tpu.memory_space<vmem>>, vector<2x128xf32>
    %c0_1 = arith.constant 0 : index
    %c0_2 = arith.constant 0 : index
    %1 = vector.load %arg3[%c0_1, %c0_2] : memref<1x128xf32, #tpu.memory_space<vmem>>, vector<1x128xf32>
    %cst = arith.constant 5.000000e-01 : f32
    %2 = vector.broadcast %cst : f32 to vector<1x128xf32>
    %3 = arith.cmpf ogt, %1, %2 : vector<1x128xf32>
    %cst_3 = arith.constant 0.000000e+00 : f32
    %4 = vector.shape_cast %3 : vector<1x128xi1> to vector<1x128xi1>
    %5 = vector.broadcast %4 : vector<1x128xi1> to vector<2x128xi1>
    %6 = vector.broadcast %cst_3 : f32 to vector<2x128xf32>
    %7 = arith.select %5, %0, %6 : vector<2x128xi1>, vector<2x128xf32>
    %c0_4 = arith.constant 0 : index
    %c0_5 = arith.constant 0 : index
    %8 = vector.load %arg4[%c0_4, %c0_5] : memref<2x128xf32, #tpu.memory_space<vmem>>, vector<2x128xf32>
    tpu.vector_store %arg4[%c0_4, %c0_5], %7 {strides = array<i32>} : memref<2x128xf32, #tpu.memory_space<vmem>>, vector<2x128xf32>,
    return
  }
  func.func @transform_0(%arg0: i32, %arg1: i32) -> (i32, i32) {
    %c0_i32 = arith.constant 0 : i32
    return %arg0, %arg1 : i32, i32
  }
  func.func @transform_1(%arg0: i32, %arg1: i32) -> (i32, i32) {
    %c0_i32 = arith.constant 0 : i32
    %c0_i32_0 = arith.constant 0 : i32
    return %c0_i32, %arg1 : i32, i32
  }
  func.func @transform_2(%arg0: i32, %arg1: i32) -> (i32, i32) {
    %c0_i32 = arith.constant 0 : i32
    return %arg0, %arg1 : i32, i32
  }
}

</mosaic_0001>

<llo_original>
// kernel: tpu_custom_call.1
$region0: #{tpu_custom_call.1}
  #allocation0 [shape = 'u32[]', space=smem, size = 0x4, offset = 0x4, fixed_abs, tag = 'smem constant byte address 0x4 - core index']
  #allocation1 [shape = 'u32[144,128]{1,0:T(1,128)}', space=vmem, size = 0x12000, scoped, tag = 'internal scratch']
  %s0 = inlined_call_operand.hbm [shape: f32[2,384], index: 0, kind: input, shape index: {}]
  %s1 = inlined_call_operand.vmem [shape: f32[1,384], index: 1, kind: input, shape index: {}]
  %s2 = inlined_call_operand.hbm [shape: f32[2,384], index: 2, kind: output, shape index: {}]
  %s3 = sld [smem:[#allocation0]]
  $region45: #{tpu_custom_call.1} parent=0
    _
  %s5 = ssub.s32 1, %s3
  %s6 = scalar_select 0, %s5, %s3
  $region1: #{tpu_custom_call.1} parent=0
    #allocation2 [shape = 'u8[2048]{0}', space=vmem, size = 0x800, scoped, tag = 'input window, operand 0']
    #allocation3 [shape = 's32[2]{0}', space=sflag, size = 0x8, scoped, tag = 'scoped memory for tpu_custom_call.1']
    #allocation4 [shape = 's32[2]{0}', space=sflag, size = 0x8, scoped, tag = 'scoped memory for tpu_custom_call.1']
    #allocation5 [shape = 'u8[2048]{0}', space=vmem, size = 0x800, scoped, tag = 'output window, operand 0']
    %7 = vsyncpa [#allocation3], 0
    %s8 = scalar_lea.sflag [#allocation3], 1
    %9 = vsyncpa %s8, 0
    %10 = vsyncpa [#allocation4], 0
    %s11 = scalar_lea.sflag [#allocation4], 1
    %12 = vsyncpa %s11, 0
    loop: start=0, step=1, limit=5
    $region2: #{tpu_custom_call.1} parent=1 // loop_pre_header
      _
    $region3: #{tpu_custom_call.1} parent=1 // loop_header
      %s14 = sphi 0, %s18
      %p15 = scmp.ge.s32.totalorder %s14, 5
      %s21 = sphi 0, %s33
      %s22 = sphi 0, %s29
      %s23 = sphi 0, %s21
      %s24 = sphi 0, %s22
      %s25 = sphi 0, %s23
      %s26 = sphi 0, %s24
      %s38 = sphi 0, %s40
      %s41 = sphi 0, %s38
      %s42 = sphi 0, %s41
      %s58 = sphi 0, %s42
      %s64 = sphi 0, %s66
      %s67 = sphi 0, %s64
      %s68 = sphi 0, %s67
      %s84 = sphi 0, %s68
      %s92 = sphi 0, %s94
      %s95 = sphi 0, %s92
      %s96 = sphi 0, %s95
      %s112 = sphi 0, %s96
    $region4: #{tpu_custom_call.1} parent=1 // loop_header_branch
      %17 = sbr.rel (%p15) target = $region8
    $region5: #{tpu_custom_call.1} parent=1 // loop_body
      %s19 = ssub.s32 %s14, 1
      %s20 = ssub.s32 %s14, 2
      %s27 = sadd.s32 1, %s22
      %p28 = scmp.ge.s32.totalorder %s27, 3
      %s29 = scalar_select %p28, 0, %s27
      %s30 = sadd.s32 1, %s21
      %s31 = scalar_select %p28, %s30, %s21
      %p32 = scmp.ge.s32.totalorder %s31, 1
      %s33 = scalar_select %p32, 0, %s31
      %s34 = ssub.s32 %s21, %s33
      %s35 = ssub.s32 %s22, %s29
      %s36 = sor.u32 %s34, %s35
      %p37 = scmp.eq.s32.totalorder %s36, 0
      %s39 = sadd.s32 %s38, 1
      %s40 = scalar_select %p37, %s38, %s39
      %p43 = pneg %p37
      %p44 = scmp.eq.s32.totalorder %s14, 2
      %p45 = por %p43, %p44
      %p46 = scmp.ne.s32.totalorder %s38, %s41
      %p47 = scmp.eq.s32.totalorder %s14, 0
      %p48 = por %p46, %p47
      %p49 = scmp.ne.s32.totalorder %s38, %s41
      %p50 = scmp.eq.s32.totalorder %s19, 2
      %p51 = por %p49, %p50
      %p52 = scmp.ne.s32.totalorder %s41, %s42
      %p53 = scmp.eq.s32.totalorder %s19, 0
      %p54 = por %p52, %p53
      %p55 = scmp.ne.s32.totalorder %s41, %s42
      %p56 = scmp.eq.s32.totalorder %s20, 2
      %p57 = por %p55, %p56
      %p59 = scmp.ne.s32.totalorder %s42, %s58
      %p60 = scmp.eq.s32.totalorder %s20, 0
      %p61 = por %p59, %p60
      %s62 = ssub.s32 %s22, %s29
      %p63 = scmp.eq.s32.totalorder %s62, 0
      %s65 = sadd.s32 %s64, 1
      %s66 = scalar_select %p63, %s64, %s65
      %p69 = pneg %p63
      %p70 = scmp.eq.s32.totalorder %s14, 2
      %p71 = por %p69, %p70
      %p72 = scmp.ne.s32.totalorder %s64, %s67
      %p73 = scmp.eq.s32.totalorder %s14, 0
      %p74 = por %p72, %p73
      %p75 = scmp.ne.s32.totalorder %s64, %s67
      %p76 = scmp.eq.s32.totalorder %s19, 2
      %p77 = por %p75, %p76
      %p78 = scmp.ne.s32.totalorder %s67, %s68
      %p79 = scmp.eq.s32.totalorder %s19, 0
      %p80 = por %p78, %p79
      %p81 = scmp.ne.s32.totalorder %s67, %s68
      %p82 = scmp.eq.s32.totalorder %s20, 2
      %p83 = por %p81, %p82
      %p85 = scmp.ne.s32.totalorder %s68, %s84
      %p86 = scmp.eq.s32.totalorder %s20, 0
      %p87 = por %p85, %p86
      %s88 = ssub.s32 %s21, %s33
      %s89 = ssub.s32 %s22, %s29
      %s90 = sor.u32 %s88, %s89
      %p91 = scmp.eq.s32.totalorder %s90, 0
      %s93 = sadd.s32 %s92, 1
      %s94 = scalar_select %p91, %s92, %s93
      %p97 = pneg %p91
      %p98 = scmp.eq.s32.totalorder %s14, 2
      %p99 = por %p97, %p98
      %p100 = scmp.ne.s32.totalorder %s92, %s95
      %p101 = scmp.eq.s32.totalorder %s14, 0
      %p102 = por %p100, %p101
      %p103 = scmp.ne.s32.totalorder %s92, %s95
      %p104 = scmp.eq.s32.totalorder %s19, 2
      %p105 = por %p103, %p104
      %p106 = scmp.ne.s32.totalorder %s95, %s96
      %p107 = scmp.eq.s32.totalorder %s19, 0
      %p108 = por %p106, %p107
      %p109 = scmp.ne.s32.totalorder %s95, %s96
      %p110 = scmp.eq.s32.totalorder %s20, 2
      %p111 = por %p109, %p110
      %p113 = scmp.ne.s32.totalorder %s96, %s112
      %p114 = scmp.eq.s32.totalorder %s20, 0
      %p115 = por %p113, %p114
      %p116 = scmp.le.s32.totalorder 1, %s14
      %p117 = scmp.lt.s32.totalorder %s14, 4
      %p118 = pnand %p116, %p117
      %p119 = pneg %p118
      // Predicated region
      $region9: #{tpu_custom_call.1} parent=5 // pred_check
        _
      $region10: #{tpu_custom_call.1} parent=5 // pred_check_branch
        %121 = sbr.rel (%p118) target = $region12
      $region11: #{tpu_custom_call.1} parent=5 // pred_region
        %s122 = ssub.s32 %s14, 1
      $region12: #{tpu_custom_call.1} parent=5 // pred_fallthru
        _
      %p123 = scmp.lt.s32.totalorder %s14, 3
      // Predicated region
      $region13: #{tpu_custom_call.1} parent=5 // pred_check
        %p124 = pneg %p123
      $region14: #{tpu_custom_call.1} parent=5 // pred_check_branch
        %126 = sbr.rel (%p124) target = $region16
      $region15: #{tpu_custom_call.1} parent=5 // pred_region
        // Predicated region
        $region17: #{tpu_custom_call.1} parent=15 // pred_check
          %p127 = pneg %p48
        $region18: #{tpu_custom_call.1} parent=15 // pred_check_branch
          %129 = sbr.rel (%p127) target = $region20
        $region19: #{tpu_custom_call.1} parent=15 // pred_region
          %s130 = sand.u32 %s38, 1
          %s131 = scalar_lea.sflag [#allocation3], %s130
          %s132 = sand.u32 %s38, 1
          %s133 = smul.addr %s132, 2
          %s134 = scalar_lea.vmem [#allocation2], %s133
          %s136 = ssub.s32 32, 32
          %137 = vsyncadd %s131, %s136
          %s138 = smul.addr %s21, 3
          %s139 = sadd.s32 %s22, %s138
          %s140 = smul.addr %s139, 32
          %s141 = scalar_lea.hbm %s0, %s140
          %s143 = sshll.u32 %s134, 4
          %s144 = int_to_ptr.vmem [resolvable:$true] %s143
          %146 = dma.hbm_to_vmem [thread:$0]  %s141, 32, %s144, %s131
        $region20: #{tpu_custom_call.1} parent=15 // pred_fallthru
          _
        // Predicated region
        $region21: #{tpu_custom_call.1} parent=15 // pred_check
          %p147 = pneg %p74
        $region22: #{tpu_custom_call.1} parent=15 // pred_check_branch
          %149 = sbr.rel (%p147) target = $region24
        $region23: #{tpu_custom_call.1} parent=15 // pred_region
          %p150 = scmp.lt.s32.totalorder %s22, 2
          %s151 = scalar_select %p150, %s22, 2
          %s152 = scalar_lea.vmem %s1, %s151
        $region24: #{tpu_custom_call.1} parent=15 // pred_fallthru
          _
      $region16: #{tpu_custom_call.1} parent=5 // pred_fallthru
        _
      %p153 = scmp.le.s32.totalorder 1, %s14
      %p154 = scmp.lt.s32.totalorder %s14, 4
      %p155 = pnand %p153, %p154
      %p156 = pneg %p155
      // Predicated region
      $region25: #{tpu_custom_call.1} parent=5 // pred_check
        _
      $region26: #{tpu_custom_call.1} parent=5 // pred_check_branch
        %158 = sbr.rel (%p155) target = $region28
      $region27: #{tpu_custom_call.1} parent=5 // pred_region
        %s159 = ssub.s32 %s14, 1
        %s160 = sand.u32 %s41, 1
        %s161 = scalar_lea.sflag [#allocation3], %s160
        %s162 = sand.u32 %s41, 1
        %s163 = smul.addr %s162, 2
        %s164 = scalar_lea.vmem [#allocation2], %s163
        // Predicated region
        $region29: #{tpu_custom_call.1} parent=27 // pred_check
          %p165 = pneg %p54
        $region30: #{tpu_custom_call.1} parent=27 // pred_check_branch
          %167 = sbr.rel (%p165) target = $region32
        $region31: #{tpu_custom_call.1} parent=27 // pred_region
          %168 = dma.done %s161, 32
        $region32: #{tpu_custom_call.1} parent=27 // pred_fallthru
          _
        %s169 = sand.u32 %s41, 1
        %s170 = scalar_lea.sflag [#allocation3], %s169
        %s171 = sand.u32 %s41, 1
        %s172 = smul.addr %s171, 2
        %s173 = scalar_lea.vmem [#allocation2], %s172
        %p174 = pneg %p54
        %p175 = pneg %p51
        %p176 = scmp.lt.s32.totalorder %s24, 2
        %s177 = scalar_select %p176, %s24, 2
        %s178 = scalar_lea.vmem %s1, %s177
        %p179 = pneg %p80
        %p180 = pneg %p77
        %p181 = pneg %p108
        %p182 = pneg %p105
        %s183 = sand.u32 %s95, 1
        %s184 = scalar_lea.sflag [#allocation4], %s183
        %s185 = sand.u32 %s95, 1
        %s186 = smul.addr %s185, 2
        %s187 = scalar_lea.vmem [#allocation5], %s186
        %p188 = scmp.lt.s32.totalorder %s24, 2
        %s189 = scalar_select %p188, %s24, 2
        %s190 = scalar_lea.vmem %s1, %s189
        %v191 = vld [vmem:[%s164] sm:$0x3]
        %v192 = vld [vmem:[%s190] sm:$0x1]
        %vm193 = vcmp.gt.f32.partialorder %v192, 0.5
        %v194 = vsel %vm193, 1, 0
        %v195 = vlaneseq
        %v196 = vshrl.u32 %v195, 7
        %v197 = vsub.s32 0, %v196
        %v198 = vrot.slane %v194, %v197
        %vm199 = vcmp.eq.s32.totalorder %v198, 1
        %v200 = vsel %vm199, %v191, 0.0
        %201 = vst [vmem:[%s187] sm:$0x3] %v200
        %s202 = sand.u32 %s95, 1
        %s203 = scalar_lea.sflag [#allocation4], %s202
        %s204 = sand.u32 %s95, 1
        %s205 = smul.addr %s204, 2
        %s206 = scalar_lea.vmem [#allocation5], %s205
        // Predicated region
        $region33: #{tpu_custom_call.1} parent=27 // pred_check
          %p207 = pneg %p105
        $region34: #{tpu_custom_call.1} parent=27 // pred_check_branch
          %209 = sbr.rel (%p207) target = $region36
        $region35: #{tpu_custom_call.1} parent=27 // pred_region
          %s211 = ssub.s32 32, 32
          %212 = vsyncadd %s203, %s211
          %s213 = smul.addr %s23, 3
          %s214 = sadd.s32 %s24, %s213
          %s215 = smul.addr %s214, 32
          %s216 = scalar_lea.hbm %s2, %s215
          %s218 = sshll.u32 %s206, 4
          %s219 = int_to_ptr.vmem [resolvable:$true] %s218
          %221 = dma.vmem_to_hbm [thread:$0]  %s219, 32, %s216, %s203
        $region36: #{tpu_custom_call.1} parent=27 // pred_fallthru
          _
      $region28: #{tpu_custom_call.1} parent=5 // pred_fallthru
        _
      %p222 = scmp.le.s32.totalorder 2, %s14
      // Predicated region
      $region37: #{tpu_custom_call.1} parent=5 // pred_check
        %p223 = pneg %p222
      $region38: #{tpu_custom_call.1} parent=5 // pred_check_branch
        %225 = sbr.rel (%p223) target = $region40
      $region39: #{tpu_custom_call.1} parent=5 // pred_region
        %s226 = ssub.s32 %s14, 2
        // Predicated region
        $region41: #{tpu_custom_call.1} parent=39 // pred_check
          %p227 = pneg %p111
        $region42: #{tpu_custom_call.1} parent=39 // pred_check_branch
          %229 = sbr.rel (%p227) target = $region44
        $region43: #{tpu_custom_call.1} parent=39 // pred_region
          %s230 = sand.u32 %s96, 1
          %s231 = scalar_lea.sflag [#allocation4], %s230
          %s232 = sand.u32 %s96, 1
          %s233 = smul.addr %s232, 2
          %s234 = scalar_lea.vmem [#allocation5], %s233
          %235 = dma.done %s231, 32
        $region44: #{tpu_custom_call.1} parent=39 // pred_fallthru
          _
      $region40: #{tpu_custom_call.1} parent=5 // pred_fallthru
        _
    $region6: #{tpu_custom_call.1} parent=1 // loop_footer
      %s18 = sadd.s32 1, %s14
    $region7: #{tpu_custom_call.1} parent=1 // loop_footer_branch
      %13 = sbr.rel target = $region3
    $region8: #{tpu_custom_call.1} parent=1 // loop_exit
      _
    %236 = vsyncpa [#allocation3], 1
    %s237 = scalar_lea.sflag [#allocation3], 1
    %238 = vsyncpa %s237, 1
    %239 = vsyncpa [#allocation4], 1
    %s240 = scalar_lea.sflag [#allocation4], 1
    %241 = vsyncpa %s240, 1

</llo_original>
